<compile_context>
chip_gen: v7x
topology: tpu7x:2x2x1
jax: 0.10.0
libtpu: 0.0.40
codegen_flags: <defaults>
</compile_context>

<pallas_src>
import functools

import jax
import jax.numpy as jnp
from jax.experimental import pallas as pl
from jax.experimental.pallas import tpu as pltpu

# TODO(synk): exact epsilon used by detail.safe_division / detail.safe_log is
# not available; a standard 1e-8 guard is used here.
EPS = 1e-8

# Budget for the double-buffered fused input tile pair (2 x 8 MiB tiles) and
# an explicit scoped-VMEM limit with generous headroom for compiler
# temporaries; 48 MiB is safe on every generation (128 MiB v5e/v6e physical,
# 64 MiB v7x physical).
_VMEM_INPUT_BUDGET = 16 << 20
_VMEM_LIMIT_BYTES = 48 << 20
_MAX_BLOCK_B = 16384


def _choose_block_b(batch, d):
    bytes_per_row = 3 * d * 4 * 2            # fused f32 row, double-buffered
    bb = _VMEM_INPUT_BUDGET // bytes_per_row
    bb = min(bb, _MAX_BLOCK_B)
    bb = min(bb, ((batch + 7) // 8) * 8)     # never bigger than padded batch
    bb = max((bb // 8) * 8, 8)               # multiple of 8 sublanes
    return int(bb)


def _info_nce_kernel(x_ref, out_ref, *, tau, directed, d, n_valid, block_b):
    i = pl.program_id(0)
    inv_tau = 1.0 / tau

    # Static lane slices straight off the VMEM ref (no full-tile value load).
    e0 = x_ref[:, 0 * d:1 * d].astype(jnp.float32)   # (block_b, d)
    e1 = x_ref[:, 1 * d:2 * d].astype(jnp.float32)
    e2 = x_ref[:, 2 * d:3 * d].astype(jnp.float32)

    # Per-triplet dot products: VPU multiply + XLU lane-reduce (MXU unused;
    # the kernel is HBM-bandwidth bound so VPU/XLU have ample slack).
    s01 = jnp.sum(e0 * e1, axis=-1, keepdims=True)   # (block_b, 1)
    s02 = jnp.sum(e0 * e2, axis=-1, keepdims=True)

    if directed:
        s_max = jnp.maximum(s01, s02)
        a = jnp.exp((s01 - s_max) * inv_tau)
        b = jnp.exp((s02 - s_max) * inv_tau)
        denom = a + b
    else:
        s12 = jnp.sum(e1 * e2, axis=-1, keepdims=True)
        s_max = jnp.maximum(jnp.maximum(s02, s12), s01)
        a = jnp.exp((s01 - s_max) * inv_tau)
        b = jnp.exp((s02 - s_max) * inv_tau)
        c = jnp.exp((s12 - s_max) * inv_tau)
        denom = a + b + c

    prob = a / (denom + EPS)                 # detail.safe_division
    losses = -jnp.log(prob + EPS)            # -detail.safe_log

    # Mask padded tail rows (last block may extend past the batch).
    row = i * block_b + jax.lax.broadcasted_iota(jnp.int32, (block_b, 1), 0)
    losses = jnp.where(row < n_valid, losses, 0.0)

    total = jnp.sum(losses)                  # per-block partial sum (scalar)

    # Write the partial into element (0,0) of this block's lane-dense (8,128)
    # output slab (one unmasked vreg store); all other elements are zero so a
    # plain sum in JAX finishes the reduction.
    sub = jax.lax.broadcasted_iota(jnp.int32, (1, 8, 128), 1)
    lane = jax.lax.broadcasted_iota(jnp.int32, (1, 8, 128), 2)
    out_ref[...] = jnp.where((sub == 0) & (lane == 0), total, 0.0)


def info_nce_loss(embeddings, *, tau, directed, block_b=None):
    """embeddings: (B, 3, D) float (or (3*B, D) with consecutive-row triplets)
    -> scalar float32 loss."""
    if embeddings.ndim == 2:
        # TODO(synk): exact grouping convention of
        # detail.calculate_similarities_groups_pt unavailable; assume
        # consecutive rows form each triplet.
        n, d = embeddings.shape
        assert n % 3 == 0, "flat embeddings must contain whole triplets"
        embeddings = embeddings.reshape(n // 3, 3, d)

    B, G, D = embeddings.shape
    assert G == 3, "expected triplet groups of size 3"

    # Single fused (B, 3*D) view: free row-major reshape, one contiguous DMA
    # per block instead of three separate per-group HBM copies and no (B,3,D)
    # sublane padding.
    x = embeddings.reshape(B, 3 * D)

    if block_b is None:
        block_b = _choose_block_b(B, D)
    num_blocks = pl.cdiv(B, block_b)

    kernel = functools.partial(
        _info_nce_kernel, tau=float(tau), directed=bool(directed), d=D,
        n_valid=B, block_b=block_b)

    n_sims = 2 if directed else 3
    cost = pl.CostEstimate(
        flops=int(2 * n_sims * B * D + 16 * B),
        transcendentals=int((n_sims + 1) * B),
        bytes_accessed=int(B * 3 * D * x.dtype.itemsize
                           + num_blocks * 8 * 128 * 4),
    )

    partials = pl.pallas_call(
        kernel,
        out_shape=jax.ShapeDtypeStruct((num_blocks, 8, 128), jnp.float32),
        grid_spec=pltpu.PrefetchScalarGridSpec(
            num_scalar_prefetch=0,
            grid=(num_blocks,),
            in_specs=[pl.BlockSpec((block_b, 3 * D), lambda i: (i, 0))],
            out_specs=pl.BlockSpec((1, 8, 128), lambda i: (i, 0, 0)),
        ),
        compiler_params=pltpu.CompilerParams(
            dimension_semantics=("parallel",),
            vmem_limit_bytes=_VMEM_LIMIT_BYTES),
        cost_estimate=cost,
    )(x)

    # Tiny final reduction over per-block partials in plain JAX.
    return jnp.sum(partials) / jnp.float32(B)


def _reference_loss(embeddings, tau, directed):
    e0, e1, e2 = embeddings[:, 0], embeddings[:, 1], embeddings[:, 2]
    s01 = jnp.sum(e0 * e1, axis=-1)
    s02 = jnp.sum(e0 * e2, axis=-1)
    if directed:
        s_max = jnp.maximum(s01, s02)
        a = jnp.exp((s01 - s_max) / tau)
        b = jnp.exp((s02 - s_max) / tau)
        denom = a + b
    else:
        s12 = jnp.sum(e1 * e2, axis=-1)
        s_max = jnp.maximum(jnp.maximum(s02, s12), s01)
        a = jnp.exp((s01 - s_max) / tau)
        b = jnp.exp((s02 - s_max) / tau)
        c = jnp.exp((s12 - s_max) / tau)
        denom = a + b + c
    prob = a / (denom + EPS)
    return jnp.mean(-jnp.log(prob + EPS))


if __name__ == "__main__":
    tau = 0.1
    key = jax.random.PRNGKey(0)
    k_small, k_big = jax.random.split(key)

    # Small case matching the module's expected (B, 3, D) triplet layout.
    emb_small = jax.random.normal(k_small, (8, 3, 32), dtype=jnp.float32)
    # Larger case exercising multiple grid blocks + tail-row masking.
    emb_big = jax.random.normal(k_big, (20, 3, 32), dtype=jnp.float32)

    for directed in (True, False):
        out = jax.block_until_ready(
            info_nce_loss(emb_small, tau=tau, directed=directed))
        ref = _reference_loss(emb_small, tau, directed)
        assert jnp.allclose(out, ref, rtol=1e-5, atol=1e-5), (
            f"mismatch (directed={directed}): {out} vs {ref}")

        out = jax.block_until_ready(
            info_nce_loss(emb_big, tau=tau, directed=directed, block_b=8))
        ref = _reference_loss(emb_big, tau, directed)
        assert jnp.allclose(out, ref, rtol=1e-5, atol=1e-5), (
            f"mismatch multi-block (directed={directed}): {out} vs {ref}")

    print("KERNEL_OK")
</pallas_src>

<mosaic_0001>
module attributes {stable_mosaic.version = 11 : i64} {
  func.func @_info_nce_kernel(%arg0: i32, %arg1: memref<8x96xf32, #tpu.memory_space<vmem>>, %arg2: memref<1x8x128xf32, #tpu.memory_space<vmem>>) attributes {dimension_semantics = [#tpu.dimension_semantics<parallel>], iteration_bounds = array<i64: 1>, scalar_prefetch = 0 : i64, scratch_operands = 0 : i64, tpu.core_type = #tpu.core_type<tc>, window_params = [{transform_indices = @transform_0, window_bounds = array<i64: 8, 96>}, {transform_indices = @transform_1, window_bounds = array<i64: 1, 8, 128>}]} {
    %c0 = arith.constant 0 : index
    %c0_0 = arith.constant 0 : index
    %0 = vector.load %arg1[%c0, %c0_0] : memref<8x96xf32, #tpu.memory_space<vmem>>, vector<8x32xf32>
    %c0_1 = arith.constant 0 : index
    %c32 = arith.constant 32 : index
    %1 = vector.load %arg1[%c0_1, %c32] : memref<8x96xf32, #tpu.memory_space<vmem>>, vector<8x32xf32>
    %c0_2 = arith.constant 0 : index
    %c64 = arith.constant 64 : index
    %2 = vector.load %arg1[%c0_2, %c64] : memref<8x96xf32, #tpu.memory_space<vmem>>, vector<8x32xf32>
    %3 = arith.mulf %0, %1 : vector<8x32xf32>
    %cst = arith.constant dense<0.000000e+00> : vector<8xf32>
    %4 = vector.multi_reduction <add>, %3, %cst [1] : vector<8x32xf32> to vector<8xf32>
    %5 = vector.shape_cast %4 : vector<8xf32> to vector<8x1xf32>
    %6 = arith.mulf %0, %2 : vector<8x32xf32>
    %cst_3 = arith.constant dense<0.000000e+00> : vector<8xf32>
    %7 = vector.multi_reduction <add>, %6, %cst_3 [1] : vector<8x32xf32> to vector<8xf32>
    %8 = vector.shape_cast %7 : vector<8xf32> to vector<8x1xf32>
    %9 = arith.maximumf %5, %8 : vector<8x1xf32>
    %10 = arith.subf %5, %9 : vector<8x1xf32>
    %cst_4 = arith.constant 1.000000e+01 : f32
    %11 = vector.broadcast %cst_4 : f32 to vector<8x1xf32>
    %12 = arith.mulf %10, %11 : vector<8x1xf32>
    %13 = math.exp %12 : vector<8x1xf32>
    %14 = arith.subf %8, %9 : vector<8x1xf32>
    %cst_5 = arith.constant 1.000000e+01 : f32
    %15 = vector.broadcast %cst_5 : f32 to vector<8x1xf32>
    %16 = arith.mulf %14, %15 : vector<8x1xf32>
    %17 = math.exp %16 : vector<8x1xf32>
    %18 = arith.addf %13, %17 : vector<8x1xf32>
    %cst_6 = arith.constant 9.99999993E-9 : f32
    %19 = vector.broadcast %cst_6 : f32 to vector<8x1xf32>
    %20 = arith.addf %18, %19 : vector<8x1xf32>
    %21 = arith.divf %13, %20 : vector<8x1xf32>
    %cst_7 = arith.constant 9.99999993E-9 : f32
    %22 = vector.broadcast %cst_7 : f32 to vector<8x1xf32>
    %23 = arith.addf %21, %22 : vector<8x1xf32>
    %24 = math.log %23 : vector<8x1xf32>
    %cst_8 = arith.constant 0.000000e+00 : f32
    %25 = vector.broadcast %cst_8 : f32 to vector<8x1xf32>
    %26 = arith.subf %25, %24 : vector<8x1xf32>
    %c8_i32 = arith.constant 8 : i32
    %27 = arith.muli %arg0, %c8_i32 : i32
    %28 = tpu.iota {dimensions = array<i32: 0>} : vector<8x1xi32>
    %29 = vector.broadcast %27 : i32 to vector<8x1xi32>
    %30 = arith.addi %29, %28 : vector<8x1xi32>
    %c8_i32_9 = arith.constant 8 : i32
    %31 = vector.broadcast %c8_i32_9 : i32 to vector<8x1xi32>
    %32 = arith.cmpi slt, %30, %31 : vector<8x1xi32>
    %cst_10 = arith.constant 0.000000e+00 : f32
    %33 = vector.broadcast %cst_10 : f32 to vector<8x1xf32>
    %34 = arith.select %32, %26, %33 : vector<8x1xi1>, vector<8x1xf32>
    %35 = vector.shape_cast %34 : vector<8x1xf32> to vector<1x8x1xf32>
    %cst_11 = arith.constant dense<0.000000e+00> : vector<1xf32>
    %36 = vector.multi_reduction <add>, %35, %cst_11 [1, 2] : vector<1x8x1xf32> to vector<1xf32>
    %37 = vector.shape_cast %36 : vector<1xf32> to vector<1x1x1xf32>
    %38 = vector.extract %37[0, 0, 0] : f32 from vector<1x1x1xf32>
    %39 = tpu.iota {dimensions = array<i32: 1>} : vector<1x8x128xi32>
    %40 = tpu.iota {dimensions = array<i32: 2>} : vector<1x8x128xi32>
    %c0_i32 = arith.constant 0 : i32
    %41 = vector.broadcast %c0_i32 : i32 to vector<1x8x128xi32>
    %42 = arith.cmpi eq, %39, %41 : vector<1x8x128xi32>
    %c0_i32_12 = arith.constant 0 : i32
    %43 = vector.broadcast %c0_i32_12 : i32 to vector<1x8x128xi32>
    %44 = arith.cmpi eq, %40, %43 : vector<1x8x128xi32>
    %45 = arith.andi %42, %44 : vector<1x8x128xi1>
    %cst_13 = arith.constant 0.000000e+00 : f32
    %46 = vector.broadcast %38 : f32 to vector<1x8x128xf32>
    %47 = vector.broadcast %cst_13 : f32 to vector<1x8x128xf32>
    %48 = arith.select %45, %46, %47 : vector<1x8x128xi1>, vector<1x8x128xf32>
    %c0_14 = arith.constant 0 : index
    %c0_15 = arith.constant 0 : index
    %c0_16 = arith.constant 0 : index
    %49 = vector.load %arg2[%c0_14, %c0_15, %c0_16] : memref<1x8x128xf32, #tpu.memory_space<vmem>>, vector<1x8x128xf32>
    tpu.vector_store %arg2[%c0_14, %c0_15, %c0_16], %48 {strides = array<i32>} : memref<1x8x128xf32, #tpu.memory_space<vmem>>, vector<1x8x128xf32>,
    return
  }
  func.func @transform_0(%arg0: i32) -> (i32, i32) {
    %c0_i32 = arith.constant 0 : i32
    %c0_i32_0 = arith.constant 0 : i32
    return %arg0, %c0_i32 : i32, i32
  }
  func.func @transform_1(%arg0: i32) -> (i32, i32, i32) {
    %c0_i32 = arith.constant 0 : i32
    %c0_i32_0 = arith.constant 0 : i32
    %c0_i32_1 = arith.constant 0 : i32
    return %arg0, %c0_i32, %c0_i32_0 : i32, i32, i32
  }
}

</mosaic_0001>

<llo_original>
// kernel: tpu_custom_call.1
$region0: #{tpu_custom_call.1}
  #allocation0 [shape = 'u32[]', space=smem, size = 0x4, offset = 0x4, fixed_abs, tag = 'smem constant byte address 0x4 - core index']
  #allocation1 [shape = 'u32[144,128]{1,0:T(1,128)}', space=vmem, size = 0x12000, scoped, tag = 'internal scratch']
  %s0 = inlined_call_operand.hbm [shape: f32[8,96], index: 0, kind: input, shape index: {}]
  %s1 = inlined_call_operand.hbm [shape: f32[1,8,128], index: 1, kind: output, shape index: {}]
  %s2 = sld [smem:[#allocation0]]
  $region18: #{tpu_custom_call.1} parent=0
    _
  %s4 = ssub.s32 1, %s2
  %s5 = scalar_select 0, %s4, %s2
  $region1: #{tpu_custom_call.1} parent=0
    #allocation2 [shape = 'u8[4096]{0}', space=vmem, size = 0x1000, scoped, tag = 'input window, operand 0, single buffered']
    #allocation3 [shape = 's32[1]{0}', space=sflag, size = 0x4, scoped, tag = 'scoped memory for tpu_custom_call.1']
    #allocation4 [shape = 's32[1]{0}', space=sflag, size = 0x4, scoped, tag = 'scoped memory for tpu_custom_call.1']
    #allocation5 [shape = 'u8[4096]{0}', space=vmem, size = 0x1000, scoped, tag = 'output window, operand 0, single buffered']
    %6 = vsyncpa [#allocation3], 0
    %7 = vsyncpa [#allocation4], 0
    // Predicated region
    $region2: #{tpu_custom_call.1} parent=1 // pred_check
      _
    $region3: #{tpu_custom_call.1} parent=1 // pred_check_branch
      %9 = sbr.rel (0) target = $region5
    $region4: #{tpu_custom_call.1} parent=1 // pred_region
      %s11 = ssub.s32 128, 128
      %12 = vsyncadd [#allocation3], %s11
      %s14 = sshll.u32 [#allocation2], 4
      %s15 = int_to_ptr.vmem [resolvable:$true] %s14
      %17 = dma.hbm_to_vmem [thread:$0]  %s0, 128, %s15, [#allocation3]
    $region5: #{tpu_custom_call.1} parent=1 // pred_fallthru
      _
    // Predicated region
    $region6: #{tpu_custom_call.1} parent=1 // pred_check
      _
    $region7: #{tpu_custom_call.1} parent=1 // pred_check_branch
      %19 = sbr.rel (0) target = $region9
    $region8: #{tpu_custom_call.1} parent=1 // pred_region
      %20 = dma.done [#allocation3], 128
    $region9: #{tpu_custom_call.1} parent=1 // pred_fallthru
      _
    %v21 = vld [vmem:[#allocation2] sm:$0xff]
    %23 = vrot.lane.b32.xlu0 %v21, 96
    %v24 = vpop.permute.xlu0 %23
    %v26 = vmul.f32 %v21, %v24
    %vm27 = vcmask 261120
    %v28 = vsel %vm27, %v26, 0.0
    %29 = vadd.xlane.f32.xlu0 %v28
    %v30 = vpop.xlane.xlu0 %29
    %31 = vrot.lane.b32.xlu0 %v21, 64
    %v32 = vpop.permute.xlu0 %31
    %v34 = vmul.f32 %v21, %v32
    %v35 = vsel %vm27, %v34, 0.0
    %36 = vadd.xlane.f32.xlu0 %v35
    %v37 = vpop.xlane.xlu0 %36
    %v38 = vmax.f32 %v30, %v37
    %v39 = vsub.f32 %v30, %v38
    %v40 = vmul.f32 %v39, 10.0
    %v41 = vmul.f32 %v40, 1.442695
    %v42 = vpow.pop %v41
    %v43 = vsub.f32 %v37, %v38
    %v44 = vmul.f32 %v43, 10.0
    %v45 = vmul.f32 %v44, 1.442695
    %v46 = vpow.pop %v45
    %v47 = vadd.f32 %v42, %v46
    %v48 = vadd.f32 %v47, 1e-08
    %v49 = vrcp.pop %v48
    %v50 = vmul.f32 %v42, %v49
    %v51 = vadd.f32 %v50, 1e-08
    %v52 = vlog2.pop %v51
    %v53 = vmul.f32 %v52, 0.6931472
    %v54 = vsub.f32 0.0, %v53
    %s55 = smul.u32 0, 8
    %v56 = vlaneseq
    %v57 = vshrl.u32 %v56, 7
    %v58 = vstv %s55
    %v59 = vadd.s32 %v58, %v57
    %vm60 = vcmp.lt.s32.totalorder %v59, 8
    %v61 = vsel %vm60, %v54, 0.0
    %vm62 = vcmask 7168
    %v63 = vsel %vm62, %v61, 0.0
    %64 = vadd.xlane.f32.xlu0 %v63
    %v65 = vpop.xlane.xlu0 %64
    %v66 = vrot.slane %v65, 4
    %v67 = vadd.f32 %v65, %v66
    %v68 = vrot.slane %v67, 2
    %v69 = vadd.f32 %v67, %v68
    %v70 = vrot.slane %v69, 1
    %v71 = vadd.f32 %v69, %v70
    %s72 = vtos %v71
    %v73 = vlaneseq
    %v74 = vand.u32 %v73, 127
    %vm75 = vcmp.eq.s32.totalorder %v57, 0
    %vm76 = vcmp.eq.s32.totalorder %v74, 0
    %vm77 = vmand %vm75, %vm76
    %v78 = vstv %s72
    %v79 = vsel %vm77, %v78, 0.0
    %80 = vst [vmem:[#allocation5] sm:$0xff] %v79
    // Predicated region
    $region10: #{tpu_custom_call.1} parent=1 // pred_check
      _
    $region11: #{tpu_custom_call.1} parent=1 // pred_check_branch
      %82 = sbr.rel (0) target = $region13
    $region12: #{tpu_custom_call.1} parent=1 // pred_region
      %s84 = ssub.s32 128, 128
      %85 = vsyncadd [#allocation4], %s84
      %s87 = sshll.u32 [#allocation5], 4
      %s88 = int_to_ptr.vmem [resolvable:$true] %s87
      %90 = dma.vmem_to_hbm [thread:$0]  %s88, 128, %s1, [#allocation4]
    $region13: #{tpu_custom_call.1} parent=1 // pred_fallthru
      _
    // Predicated region
    $region14: #{tpu_custom_call.1} parent=1 // pred_check
      _
    $region15: #{tpu_custom_call.1} parent=1 // pred_check_branch
      %92 = sbr.rel (0) target = $region17
    $region16: #{tpu_custom_call.1} parent=1 // pred_region
      %93 = dma.done [#allocation4], 128
    $region17: #{tpu_custom_call.1} parent=1 // pred_fallthru
      _
    %94 = vsyncpa [#allocation3], 1
    %95 = vsyncpa [#allocation4], 1

</llo_original>
